<compile_context>
chip_gen: v6e
topology: v6e:2x2x1
jax: 0.10.0
libtpu: 0.0.40
codegen_flags: <defaults>
</compile_context>

<pallas_src>
import functools
from typing import NamedTuple

import jax
import jax.numpy as jnp
from jax.experimental import pallas as pl
from jax.experimental.pallas import tpu as pltpu


def _round_up(n, m):
    return ((n + m - 1) // m) * m


def _actor_kernel(x_ref, w_ref, b_ref, out_ref, *, scale, obs_pad, act_dim):
    """Fused 4-layer MLP on one (TB, obs_pad) batch tile.

    x_ref:  (TB, obs_pad)     caller dtype (f32/bf16), un-padded obs features
    w_ref:  (4, FEAT, FEAT)   compute dtype, zero-padded packed weights (in,out)
    b_ref:  (4, FEAT)         f32, zero-padded packed biases
    out_ref:(TB, act_dim)     f32, only the real action columns are written back
    """
    cdt = w_ref.dtype
    b = b_ref[...]                               # (4, FEAT), resident, one load
    h = x_ref[...].astype(cdt)                   # cast to MXU operand dtype in VMEM

    # Layer 1: contract only over the real observation features.
    z = jnp.dot(h, w_ref[0, :obs_pad, :],
                preferred_element_type=jnp.float32) + b[0:1, :]
    # Layers 2..4 (statically unrolled); ReLU in f32, re-cast matmul operand only.
    for i in range(1, 4):
        h = jnp.maximum(z, 0.0).astype(cdt)
        z = jnp.dot(h, w_ref[i],
                    preferred_element_type=jnp.float32) + b[i:i + 1, :]

    a = jnp.tanh(z[:, :act_dim])                 # EUP, f32, real columns only
    if scale != 1.0:                             # specialize away the common *1 case
        a = a * jnp.float32(scale)
    out_ref[...] = a.astype(out_ref.dtype)


class PackedActorParams(NamedTuple):
    w: jax.Array        # (4, FEAT, FEAT) compute dtype
    b: jax.Array        # (4, FEAT) f32
    obs_dim: int
    obs_pad: int
    act_dim: int
    feat: int


def pack_actor_params(params, *, compute_dtype=jnp.bfloat16):
    """Pack (w1,b1,...,w4,b4) ONCE into two resident slabs.

    Hoisted out of the per-call forward path (perf feedback: don't rebuild the
    packed slab with 8 .at[].set scatters on every forward)."""
    w1, b1, w2, b2, w3, b3, w4, b4 = params
    obs_dim = w1.shape[0]
    hidden = w2.shape[0]
    act_dim = w4.shape[1]
    feat = _round_up(max(obs_dim, hidden, act_dim), 128)
    obs_pad = _round_up(obs_dim, 8)

    ws = (w1, w2, w3, w4)
    bs = (b1, b2, b3, b4)
    w_packed = jnp.zeros((4, feat, feat), compute_dtype)
    b_packed = jnp.zeros((4, feat), jnp.float32)
    for i, (w, b) in enumerate(zip(ws, bs)):
        fin, fout = w.shape
        w_packed = w_packed.at[i, :fin, :fout].set(w.astype(compute_dtype))
        b_packed = b_packed.at[i, :fout].set(b.reshape(-1).astype(jnp.float32))
    return PackedActorParams(w=w_packed, b=b_packed, obs_dim=obs_dim,
                             obs_pad=obs_pad, act_dim=act_dim, feat=feat)


def actor_forward(x, packed: PackedActorParams, *, max_action, min_action,
                  block_batch=2048):
    """Run the Actor forward pass with a batch-tiled fused Pallas kernel."""
    batch, obs_in = x.shape
    assert obs_in == packed.obs_dim, "x feature dim does not match packed params"
    obs_pad, act_dim, feat = packed.obs_pad, packed.act_dim, packed.feat

    # Sublane multiple: 16 for bf16 operands (native (16,128) tile), else 8.
    sub = 16 if packed.w.dtype.itemsize == 2 else 8
    batch_sub = _round_up(batch, sub)

    # Batch tile: capped by block_batch; guarantee >= 2 grid steps when the
    # batch allows it so ("parallel",) can shard across both v7x TensorCores,
    # then balance tile sizes to minimize padded rows.
    tb0 = min(_round_up(block_batch, sub), batch_sub)
    nsteps = pl.cdiv(batch_sub, tb0)
    if nsteps == 1 and batch_sub >= 2 * sub:
        nsteps = 2
    tb = _round_up(pl.cdiv(batch_sub, nsteps), sub)
    batch_pad = _round_up(batch, tb)
    grid = (batch_pad // tb,)

    # Only materialize a pad when actually needed (rows to the tile multiple,
    # columns only up to the next multiple of 8 — NOT to 128).
    pad_rows, pad_cols = batch_pad - batch, obs_pad - obs_in
    xp = x if (pad_rows == 0 and pad_cols == 0) else jnp.pad(
        x, ((0, pad_rows), (0, pad_cols)))

    # Same semantics as np.int((max - min) / 2): truncation toward zero.
    # TODO(synk): action ranges narrower than 2 (e.g. high=0.5, low=-0.5) give
    # scale=0 and all-zero actions; this mirrors the PyTorch module but is
    # almost certainly a bug in the original model.
    scale = float(int((max_action - min_action) / 2))

    kernel = functools.partial(_actor_kernel, scale=scale,
                               obs_pad=obs_pad, act_dim=act_dim)

    w_bytes = packed.w.size * packed.w.dtype.itemsize
    cost = pl.CostEstimate(
        flops=2 * batch_pad * (obs_pad * feat + 3 * feat * feat),
        transcendentals=batch_pad * act_dim,
        bytes_accessed=(xp.size * xp.dtype.itemsize          # streamed x
                        + w_bytes + packed.b.size * 4        # resident params
                        + batch_pad * act_dim * 4),          # narrow f32 output
    )

    out = pl.pallas_call(
        kernel,
        out_shape=jax.ShapeDtypeStruct((batch_pad, act_dim), jnp.float32),
        grid=grid,
        in_specs=[
            # x: streamed per batch tile, last dim == full array dim (no 128 pad).
            pl.BlockSpec((tb, obs_pad), lambda i: (i, 0)),
            # Weights / biases: constant index_map -> fetched once, VMEM-resident.
            pl.BlockSpec((4, feat, feat), lambda i: (0, 0, 0)),
            pl.BlockSpec((4, feat), lambda i: (0, 0)),
        ],
        # Narrow output: act_dim == full array last dim, rows contiguous in HBM.
        out_specs=pl.BlockSpec((tb, act_dim), lambda i: (i, 0)),
        compiler_params=pltpu.CompilerParams(
            dimension_semantics=("parallel",),   # shard batch across TCs (v7x)
        ),
        cost_estimate=cost,
    )(xp, packed.w, packed.b)

    return out[:batch] if batch_pad != batch else out


def init_actor_params(key, obs_dim, act_dim, hidden=64):
    """Deterministic synthetic parameters (PyTorch Linear-style uniform init),
    stored as (in, out) weights and (1, out) biases."""
    keys = jax.random.split(key, 8)
    dims = [(obs_dim, hidden), (hidden, hidden), (hidden, hidden), (hidden, act_dim)]
    params = []
    for i, (fin, fout) in enumerate(dims):
        bound = 1.0 / jnp.sqrt(jnp.float32(fin))
        w = jax.random.uniform(keys[2 * i], (fin, fout), jnp.float32, -bound, bound)
        b = jax.random.uniform(keys[2 * i + 1], (1, fout), jnp.float32, -bound, bound)
        params += [w, b]
    return tuple(params)


def actor_reference(x, params, *, max_action, min_action):
    """Pure-JAX reference for correctness checking."""
    w1, b1, w2, b2, w3, b3, w4, b4 = params
    h = jax.nn.relu(x @ w1 + b1)
    h = jax.nn.relu(h @ w2 + b2)
    h = jax.nn.relu(h @ w3 + b3)
    scale = float(int((max_action - min_action) / 2))
    return scale * jnp.tanh(h @ w4 + b4)


if __name__ == "__main__":
    key = jax.random.PRNGKey(0)
    k_x, k_p, k_x2 = jax.random.split(key, 3)

    batch, obs_dim, act_dim = 8, 16, 8      # small shapes consistent with the module
    x = jax.random.normal(k_x, (batch, obs_dim), jnp.float32)
    params = init_actor_params(k_p, obs_dim, act_dim)

    # Pack parameters ONCE (hoisted out of the forward path) for each precision.
    packed_f32 = pack_actor_params(params, compute_dtype=jnp.float32)
    packed_bf16 = pack_actor_params(params, compute_dtype=jnp.bfloat16)  # v6e/v7x default

    # 1) f32 path, small batch, single tile, scale == 1 (strict check).
    out = actor_forward(x, packed_f32, max_action=1.0, min_action=-1.0)
    out = jax.block_until_ready(out)
    ref = actor_reference(x, params, max_action=1.0, min_action=-1.0)
    assert out.shape == (batch, act_dim)
    assert jnp.allclose(out, ref, atol=1e-5, rtol=1e-5), "f32 mismatch vs reference"

    # 2) f32 path with a multi-step batch grid (row padding + pipelining), scale=3.
    batch2 = 300
    x2 = jax.random.normal(k_x2, (batch2, obs_dim), jnp.float32)
    out2 = actor_forward(x2, packed_f32, max_action=4.0, min_action=-2.0,
                         block_batch=128)
    out2 = jax.block_until_ready(out2)
    ref2 = actor_reference(x2, params, max_action=4.0, min_action=-2.0)
    assert out2.shape == (batch2, act_dim)
    assert jnp.allclose(out2, ref2, atol=1e-5, rtol=1e-5), "grid mismatch vs reference"

    # 3) bf16 matmul operands (default packing), f32 accumulate / elementwise,
    #    auto-split into a 2-step grid (v7x megacore path); loose tolerance.
    out3 = actor_forward(x2, packed_bf16, max_action=1.0, min_action=-1.0)
    out3 = jax.block_until_ready(out3)
    ref3 = actor_reference(x2, params, max_action=1.0, min_action=-1.0)
    assert out3.shape == (batch2, act_dim)
    assert jnp.allclose(out3, ref3, atol=5e-2, rtol=5e-2), "bf16 mismatch vs reference"

    print("KERNEL_OK")
</pallas_src>

<mosaic_0001>
module attributes {stable_mosaic.version = 11 : i64} {
  func.func @_actor_kernel(%arg0: i32, %arg1: memref<8x16xf32, #tpu.memory_space<vmem>>, %arg2: memref<4x128x128xf32, #tpu.memory_space<vmem>>, %arg3: memref<4x128xf32, #tpu.memory_space<vmem>>, %arg4: memref<8x8xf32, #tpu.memory_space<vmem>>) attributes {dimension_semantics = [#tpu.dimension_semantics<parallel>], iteration_bounds = array<i64: 1>, scalar_prefetch = 0 : i64, scratch_operands = 0 : i64, tpu.core_type = #tpu.core_type<tc>, window_params = [{transform_indices = @transform_0, window_bounds = array<i64: 8, 16>}, {pipeline_mode = #tpu.pipeline_mode<synchronous>, transform_indices = @transform_1, window_bounds = array<i64: 4, 128, 128>}, {pipeline_mode = #tpu.pipeline_mode<synchronous>, transform_indices = @transform_2, window_bounds = array<i64: 4, 128>}, {transform_indices = @transform_3, window_bounds = array<i64: 8, 8>}]} {
    %c0 = arith.constant 0 : index
    %c0_0 = arith.constant 0 : index
    %0 = vector.load %arg3[%c0, %c0_0] : memref<4x128xf32, #tpu.memory_space<vmem>>, vector<4x128xf32>
    %c0_1 = arith.constant 0 : index
    %c0_2 = arith.constant 0 : index
    %1 = vector.load %arg1[%c0_1, %c0_2] : memref<8x16xf32, #tpu.memory_space<vmem>>, vector<8x16xf32>
    %c0_3 = arith.constant 0 : index
    %c0_4 = arith.constant 0 : index
    %c0_5 = arith.constant 0 : index
    %2 = vector.load %arg2[%c0_3, %c0_4, %c0_5] : memref<4x128x128xf32, #tpu.memory_space<vmem>>, vector<1x16x128xf32>
    %3 = vector.shape_cast %2 : vector<1x16x128xf32> to vector<16x128xf32>
    %cst = arith.constant dense<0.000000e+00> : vector<8x128xf32>
    %4 = tpu.matmul %1, %3, %cst {dimension_numbers = #tpu.dot_dimension_numbers<[1], [0], [0], [1], [0, 0, 1, 1], [], []>} : vector<8x16xf32>, vector<16x128xf32>, vector<8x128xf32> -> vector<8x128xf32>
    %5 = vector.extract_strided_slice %0 {offsets = [0, 0], sizes = [1, 128], strides = [1, 1]} : vector<4x128xf32> to vector<1x128xf32>
    %6 = vector.broadcast %5 : vector<1x128xf32> to vector<8x128xf32>
    %7 = arith.addf %4, %6 : vector<8x128xf32>
    %cst_6 = arith.constant 0.000000e+00 : f32
    %8 = vector.broadcast %cst_6 : f32 to vector<8x128xf32>
    %9 = arith.maximumf %7, %8 : vector<8x128xf32>
    %c1 = arith.constant 1 : index
    %c0_7 = arith.constant 0 : index
    %c0_8 = arith.constant 0 : index
    %10 = vector.load %arg2[%c1, %c0_7, %c0_8] : memref<4x128x128xf32, #tpu.memory_space<vmem>>, vector<1x128x128xf32>
    %11 = vector.shape_cast %10 : vector<1x128x128xf32> to vector<128x128xf32>
    %cst_9 = arith.constant dense<0.000000e+00> : vector<8x128xf32>
    %12 = tpu.matmul %9, %11, %cst_9 {dimension_numbers = #tpu.dot_dimension_numbers<[1], [0], [0], [1], [0, 0, 1, 1], [], []>} : vector<8x128xf32>, vector<128x128xf32>, vector<8x128xf32> -> vector<8x128xf32>
    %13 = vector.extract_strided_slice %0 {offsets = [1, 0], sizes = [1, 128], strides = [1, 1]} : vector<4x128xf32> to vector<1x128xf32>
    %14 = vector.broadcast %13 : vector<1x128xf32> to vector<8x128xf32>
    %15 = arith.addf %12, %14 : vector<8x128xf32>
    %cst_10 = arith.constant 0.000000e+00 : f32
    %16 = vector.broadcast %cst_10 : f32 to vector<8x128xf32>
    %17 = arith.maximumf %15, %16 : vector<8x128xf32>
    %c2 = arith.constant 2 : index
    %c0_11 = arith.constant 0 : index
    %c0_12 = arith.constant 0 : index
    %18 = vector.load %arg2[%c2, %c0_11, %c0_12] : memref<4x128x128xf32, #tpu.memory_space<vmem>>, vector<1x128x128xf32>
    %19 = vector.shape_cast %18 : vector<1x128x128xf32> to vector<128x128xf32>
    %cst_13 = arith.constant dense<0.000000e+00> : vector<8x128xf32>
    %20 = tpu.matmul %17, %19, %cst_13 {dimension_numbers = #tpu.dot_dimension_numbers<[1], [0], [0], [1], [0, 0, 1, 1], [], []>} : vector<8x128xf32>, vector<128x128xf32>, vector<8x128xf32> -> vector<8x128xf32>
    %21 = vector.extract_strided_slice %0 {offsets = [2, 0], sizes = [1, 128], strides = [1, 1]} : vector<4x128xf32> to vector<1x128xf32>
    %22 = vector.broadcast %21 : vector<1x128xf32> to vector<8x128xf32>
    %23 = arith.addf %20, %22 : vector<8x128xf32>
    %cst_14 = arith.constant 0.000000e+00 : f32
    %24 = vector.broadcast %cst_14 : f32 to vector<8x128xf32>
    %25 = arith.maximumf %23, %24 : vector<8x128xf32>
    %c3 = arith.constant 3 : index
    %c0_15 = arith.constant 0 : index
    %c0_16 = arith.constant 0 : index
    %26 = vector.load %arg2[%c3, %c0_15, %c0_16] : memref<4x128x128xf32, #tpu.memory_space<vmem>>, vector<1x128x128xf32>
    %27 = vector.shape_cast %26 : vector<1x128x128xf32> to vector<128x128xf32>
    %cst_17 = arith.constant dense<0.000000e+00> : vector<8x128xf32>
    %28 = tpu.matmul %25, %27, %cst_17 {dimension_numbers = #tpu.dot_dimension_numbers<[1], [0], [0], [1], [0, 0, 1, 1], [], []>} : vector<8x128xf32>, vector<128x128xf32>, vector<8x128xf32> -> vector<8x128xf32>
    %29 = vector.extract_strided_slice %0 {offsets = [3, 0], sizes = [1, 128], strides = [1, 1]} : vector<4x128xf32> to vector<1x128xf32>
    %30 = vector.broadcast %29 : vector<1x128xf32> to vector<8x128xf32>
    %31 = arith.addf %28, %30 : vector<8x128xf32>
    %32 = vector.extract_strided_slice %31 {offsets = [0, 0], sizes = [8, 8], strides = [1, 1]} : vector<8x128xf32> to vector<8x8xf32>
    %33 = math.tanh %32 : vector<8x8xf32>
    %c0_18 = arith.constant 0 : index
    %c0_19 = arith.constant 0 : index
    %34 = vector.load %arg4[%c0_18, %c0_19] : memref<8x8xf32, #tpu.memory_space<vmem>>, vector<8x8xf32>
    tpu.vector_store %arg4[%c0_18, %c0_19], %33 {strides = array<i32>} : memref<8x8xf32, #tpu.memory_space<vmem>>, vector<8x8xf32>,
    return
  }
  func.func @transform_0(%arg0: i32) -> (i32, i32) {
    %c0_i32 = arith.constant 0 : i32
    %c0_i32_0 = arith.constant 0 : i32
    return %arg0, %c0_i32 : i32, i32
  }
  func.func @transform_1(%arg0: i32) -> (i32, i32, i32) {
    %c0_i32 = arith.constant 0 : i32
    %c0_i32_0 = arith.constant 0 : i32
    %c0_i32_1 = arith.constant 0 : i32
    %c0_i32_2 = arith.constant 0 : i32
    return %c0_i32, %c0_i32_0, %c0_i32_1 : i32, i32, i32
  }
  func.func @transform_2(%arg0: i32) -> (i32, i32) {
    %c0_i32 = arith.constant 0 : i32
    %c0_i32_0 = arith.constant 0 : i32
    %c0_i32_1 = arith.constant 0 : i32
    return %c0_i32, %c0_i32_0 : i32, i32
  }
  func.func @transform_3(%arg0: i32) -> (i32, i32) {
    %c0_i32 = arith.constant 0 : i32
    %c0_i32_0 = arith.constant 0 : i32
    return %arg0, %c0_i32 : i32, i32
  }
}

</mosaic_0001>

<llo_original>
// kernel: tpu_custom_call.1
$region0: #{tpu_custom_call.1}
  #allocation0 [shape = 'u32[]', space=smem, size = 0x4, offset = 0x4, fixed_abs, tag = 'smem constant byte address 0x4 - core index']
  #allocation1 [shape = 'u32[144,128]{1,0:T(1,128)}', space=vmem, size = 0x12000, scoped, tag = 'internal scratch']
  %s0 = inlined_call_operand.hbm [shape: f32[8,16], index: 0, kind: input, shape index: {}]
  %s1 = inlined_call_operand.hbm [shape: f32[4,128,128], index: 1, kind: input, shape index: {}]
  %s2 = inlined_call_operand.hbm [shape: f32[4,128], index: 2, kind: input, shape index: {}]
  %s3 = inlined_call_operand.hbm [shape: f32[8,8], index: 3, kind: output, shape index: {}]
  %s4 = sld [smem:[#allocation0]]
  $region34: #{tpu_custom_call.1} parent=0
    _
  %s6 = ssub.s32 1, %s4
  %s7 = scalar_select 0, %s6, %s4
  $region1: #{tpu_custom_call.1} parent=0
    #allocation2 [shape = 'u8[4096]{0}', space=vmem, size = 0x1000, scoped, tag = 'input window, operand 0, single buffered']
    #allocation3 [shape = 's32[1]{0}', space=sflag, size = 0x4, scoped, tag = 'scoped memory for tpu_custom_call.1']
    #allocation4 [shape = 's32[1]{0}', space=sflag, size = 0x4, scoped, tag = 'scoped memory for tpu_custom_call.1']
    #allocation5 [shape = 'u8[262144]{0}', space=vmem, size = 0x40000, scoped, tag = 'input window, operand 1, single buffered']
    #allocation6 [shape = 's32[1]{0}', space=sflag, size = 0x4, scoped, tag = 'scoped memory for tpu_custom_call.1']
    #allocation7 [shape = 'u8[2048]{0}', space=vmem, size = 0x800, scoped, tag = 'input window, operand 2, single buffered']
    #allocation8 [shape = 'u8[4096]{0}', space=vmem, size = 0x1000, scoped, tag = 'output window, operand 0, single buffered']
    %8 = vsyncpa [#allocation3], 0
    %9 = vsyncpa [#allocation6], 0
    %10 = vsyncpa [#allocation4], 0
    // Predicated region
    $region2: #{tpu_custom_call.1} parent=1 // pred_check
      _
    $region3: #{tpu_custom_call.1} parent=1 // pred_check_branch
      %12 = sbr.rel (0) target = $region5
    $region4: #{tpu_custom_call.1} parent=1 // pred_region
      %s14 = ssub.s32 128, 128
      %15 = vsyncadd [#allocation3], %s14
      %s17 = sshll.u32 [#allocation2], 4
      %s18 = int_to_ptr.vmem [resolvable:$true] %s17
      %20 = dma.hbm_to_vmem [thread:$0]  %s0, 128, %s18, [#allocation3]
    $region5: #{tpu_custom_call.1} parent=1 // pred_fallthru
      _
    // Predicated region
    $region6: #{tpu_custom_call.1} parent=1 // pred_check
      _
    $region7: #{tpu_custom_call.1} parent=1 // pred_check_branch
      %22 = sbr.rel (0) target = $region9
    $region8: #{tpu_custom_call.1} parent=1 // pred_region
      %s24 = ssub.s32 8192, 8192
      %25 = vsyncadd [#allocation6], %s24
      %s26 = sshll.u32 [#allocation5], 4
      %s27 = int_to_ptr.vmem [resolvable:$true] %s26
      %32 = dma.hbm_to_vmem [thread:$0]  %s1, 8192, %s27, [#allocation6], 128, 128, 8
    $region9: #{tpu_custom_call.1} parent=1 // pred_fallthru
      _
    // Predicated region
    $region10: #{tpu_custom_call.1} parent=1 // pred_check
      _
    $region11: #{tpu_custom_call.1} parent=1 // pred_check_branch
      %34 = sbr.rel (0) target = $region13
    $region12: #{tpu_custom_call.1} parent=1 // pred_region
      %s36 = ssub.s32 64, 64
      %37 = vsyncadd [#allocation6], %s36
      %s39 = sshll.u32 [#allocation7], 4
      %s40 = int_to_ptr.vmem [resolvable:$true] %s39
      %42 = dma.hbm_to_vmem [thread:$0]  %s2, 64, %s40, [#allocation6]
    $region13: #{tpu_custom_call.1} parent=1 // pred_fallthru
      _
    // Predicated region
    $region14: #{tpu_custom_call.1} parent=1 // pred_check
      _
    $region15: #{tpu_custom_call.1} parent=1 // pred_check_branch
      %44 = sbr.rel (0) target = $region17
    $region16: #{tpu_custom_call.1} parent=1 // pred_region
      %45 = dma.done [#allocation3], 128
    $region17: #{tpu_custom_call.1} parent=1 // pred_fallthru
      _
    // Predicated region
    $region18: #{tpu_custom_call.1} parent=1 // pred_check
      _
    $region19: #{tpu_custom_call.1} parent=1 // pred_check_branch
      %47 = sbr.rel (0) target = $region21
    $region20: #{tpu_custom_call.1} parent=1 // pred_region
      %48 = dma.done [#allocation6], 8192
    $region21: #{tpu_custom_call.1} parent=1 // pred_fallthru
      _
    // Predicated region
    $region22: #{tpu_custom_call.1} parent=1 // pred_check
      _
    $region23: #{tpu_custom_call.1} parent=1 // pred_check_branch
      %50 = sbr.rel (0) target = $region25
    $region24: #{tpu_custom_call.1} parent=1 // pred_region
      %51 = dma.done [#allocation6], 64
    $region25: #{tpu_custom_call.1} parent=1 // pred_fallthru
      _
    %v52 = vld [vmem:[#allocation7] sm:$0xf]
    %v53 = vld [vmem:[#allocation2] sm:$0xff]
    %v54 = vld [vmem:[#allocation5] sm:$0xff]
    %v55 = vld [vmem:[#allocation5 + $0x8] sm:$0xff]
    %v56 = vlaneseq
    %v57 = vshrl.u32 %v56, 7
    %v58 = vsub.s32 0, %v57
    %v59 = vrot.slane %v52, %v58
    %vm60 = vcmask 130048
    %v62 = vsel %vm60, %v53, 0
    %64 = vmatprep.subr.mxu0 0.0
    %65 = vmatpush1.msra.mxu0 0.0
    %66 = vmatprep.subr.mxu0 0.0
    %67 = vmatpush1.msra.mxu0 0.0
    %68 = vmatprep.subr.mxu0 0.0
    %69 = vmatpush1.msra.mxu0 0.0
    %70 = vmatprep.subr.mxu0 0.0
    %71 = vmatpush1.msra.mxu0 0.0
    %72 = vmatprep.subr.mxu0 0.0
    %73 = vmatpush1.msra.mxu0 0.0
    %74 = vmatprep.subr.mxu0 0.0
    %75 = vmatpush1.msra.mxu0 0.0
    %76 = vmatprep.subr.mxu0 0.0
    %77 = vmatpush1.msra.mxu0 0.0
    %78 = vmatprep.subr.mxu0 0.0
    %79 = vmatpush1.msra.mxu0 0.0
    %80 = vmatprep.subr.mxu0 0.0
    %81 = vmatpush1.msra.mxu0 0.0
    %82 = vmatprep.subr.mxu0 0.0
    %83 = vmatpush1.msra.mxu0 0.0
    %84 = vmatprep.subr.mxu0 0.0
    %85 = vmatpush1.msra.mxu0 0.0
    %86 = vmatprep.subr.mxu0 0.0
    %87 = vmatpush1.msra.mxu0 0.0
    %88 = vmatprep.subr.mxu0 0.0
    %89 = vmatpush1.msra.mxu0 0.0
    %90 = vmatprep.subr.mxu0 0.0
    %91 = vmatpush1.msra.mxu0 0.0
    %92 = vmatprep.subr.mxu0 0.0
    %93 = vmatpush1.msra.mxu0 %v55
    %94 = vmatprep.subr.mxu0 0.0
    %95 = vmatpush1.msra.mxu0 %v54
    %96 = vmatprep.subr.mxu0 0.0
    %97 = vmatpush2.msra.mxu0 0.0
    %98 = vmatprep.subr.mxu0 0.0
    %99 = vmatpush2.msra.mxu0 0.0
    %100 = vmatprep.subr.mxu0 0.0
    %101 = vmatpush2.msra.mxu0 0.0
    %102 = vmatprep.subr.mxu0 0.0
    %103 = vmatpush2.msra.mxu0 0.0
    %104 = vmatprep.subr.mxu0 0.0
    %105 = vmatpush2.msra.mxu0 0.0
    %106 = vmatprep.subr.mxu0 0.0
    %107 = vmatpush2.msra.mxu0 0.0
    %108 = vmatprep.subr.mxu0 0.0
    %109 = vmatpush2.msra.mxu0 0.0
    %110 = vmatprep.subr.mxu0 0.0
    %111 = vmatpush2.msra.mxu0 0.0
    %112 = vmatprep.subr.mxu0 0.0
    %113 = vmatpush2.msra.mxu0 0.0
    %114 = vmatprep.subr.mxu0 0.0
    %115 = vmatpush2.msra.mxu0 0.0
    %116 = vmatprep.subr.mxu0 0.0
    %117 = vmatpush2.msra.mxu0 0.0
    %118 = vmatprep.subr.mxu0 0.0
    %119 = vmatpush2.msra.mxu0 0.0
    %120 = vmatprep.subr.mxu0 0.0
    %121 = vmatpush2.msra.mxu0 0.0
    %122 = vmatprep.subr.mxu0 0.0
    %123 = vmatpush2.msra.mxu0 0.0
    %124 = vmatprep.subr.mxu0 0.0
    %125 = vmatpush2.msra.mxu0 0.0
    %126 = vmatprep.subr.mxu0 0.0
    %127 = vmatpush2.msra.mxu0 0.0
    %128 = vmatprep.mubr.f32.mxu0 0.0
    %129 = vmatmul.mubr.f32.gmra.mxu0 %v62
    %v130 = vpop.f32.mrf.mxu0
    %v131 = vadd.f32 %v59, %v130
    %v132 = vpop.f32.mrf.mxu0
    %133 = vdwg.mxu0
    %v134 = vmax.f32 %v131, 0.0
    %s135 = scalar_lea.vmem [#allocation5], 128
    %v136 = vld [vmem:[%s135] sm:$0xff]
    %v137 = vld [vmem:[%s135 + $0x8] sm:$0xff]
    %v138 = vld [vmem:[%s135 + $0x10] sm:$0xff]
    %v139 = vld [vmem:[%s135 + $0x18] sm:$0xff]
    %v140 = vld [vmem:[%s135 + $0x20] sm:$0xff]
    %v141 = vld [vmem:[%s135 + $0x28] sm:$0xff]
    %v142 = vld [vmem:[%s135 + $0x30] sm:$0xff]
    %v143 = vld [vmem:[%s135 + $0x38] sm:$0xff]
    %v144 = vld [vmem:[%s135 + $0x40] sm:$0xff]
    %v145 = vld [vmem:[%s135 + $0x48] sm:$0xff]
    %v146 = vld [vmem:[%s135 + $0x50] sm:$0xff]
    %v147 = vld [vmem:[%s135 + $0x58] sm:$0xff]
    %v148 = vld [vmem:[%s135 + $0x60] sm:$0xff]
    %v149 = vld [vmem:[%s135 + $0x68] sm:$0xff]
    %v150 = vld [vmem:[%s135 + $0x70] sm:$0xff]
    %v151 = vld [vmem:[%s135 + $0x78] sm:$0xff]
    %v152 = vlaneseq
    %v153 = vshrl.u32 %v152, 7
    %v154 = vsub.s32 1, %v153
    %v155 = vrot.slane %v52, %v154
    %156 = vmatprep.subr.mxu0 0.0
    %157 = vmatpush1.msra.mxu0 %v151
    %158 = vmatprep.subr.mxu0 0.0
    %159 = vmatpush1.msra.mxu0 %v150
    %160 = vmatprep.subr.mxu0 0.0
    %161 = vmatpush1.msra.mxu0 %v149
    %162 = vmatprep.subr.mxu0 0.0
    %163 = vmatpush1.msra.mxu0 %v148
    %164 = vmatprep.subr.mxu0 0.0
    %165 = vmatpush1.msra.mxu0 %v147
    %166 = vmatprep.subr.mxu0 0.0
    %167 = vmatpush1.msra.mxu0 %v146
    %168 = vmatprep.subr.mxu0 0.0
    %169 = vmatpush1.msra.mxu0 %v145
    %170 = vmatprep.subr.mxu0 0.0
    %171 = vmatpush1.msra.mxu0 %v144
    %172 = vmatprep.subr.mxu0 0.0
    %173 = vmatpush1.msra.mxu0 %v143
    %174 = vmatprep.subr.mxu0 0.0
    %175 = vmatpush1.msra.mxu0 %v142
    %176 = vmatprep.subr.mxu0 0.0
    %177 = vmatpush1.msra.mxu0 %v141
    %178 = vmatprep.subr.mxu0 0.0
    %179 = vmatpush1.msra.mxu0 %v140
    %180 = vmatprep.subr.mxu0 0.0
    %181 = vmatpush1.msra.mxu0 %v139
    %182 = vmatprep.subr.mxu0 0.0
    %183 = vmatpush1.msra.mxu0 %v138
    %184 = vmatprep.subr.mxu0 0.0
    %185 = vmatpush1.msra.mxu0 %v137
    %186 = vmatprep.subr.mxu0 0.0
    %187 = vmatpush1.msra.mxu0 %v136
    %188 = vmatprep.subr.mxu0 0.0
    %189 = vmatpush2.msra.mxu0 0.0
    %190 = vmatprep.subr.mxu0 0.0
    %191 = vmatpush2.msra.mxu0 0.0
    %192 = vmatprep.subr.mxu0 0.0
    %193 = vmatpush2.msra.mxu0 0.0
    %194 = vmatprep.subr.mxu0 0.0
    %195 = vmatpush2.msra.mxu0 0.0
    %196 = vmatprep.subr.mxu0 0.0
    %197 = vmatpush2.msra.mxu0 0.0
    %198 = vmatprep.subr.mxu0 0.0
    %199 = vmatpush2.msra.mxu0 0.0
    %200 = vmatprep.subr.mxu0 0.0
    %201 = vmatpush2.msra.mxu0 0.0
    %202 = vmatprep.subr.mxu0 0.0
    %203 = vmatpush2.msra.mxu0 0.0
    %204 = vmatprep.subr.mxu0 0.0
    %205 = vmatpush2.msra.mxu0 0.0
    %206 = vmatprep.subr.mxu0 0.0
    %207 = vmatpush2.msra.mxu0 0.0
    %208 = vmatprep.subr.mxu0 0.0
    %209 = vmatpush2.msra.mxu0 0.0
    %210 = vmatprep.subr.mxu0 0.0
    %211 = vmatpush2.msra.mxu0 0.0
    %212 = vmatprep.subr.mxu0 0.0
    %213 = vmatpush2.msra.mxu0 0.0
    %214 = vmatprep.subr.mxu0 0.0
    %215 = vmatpush2.msra.mxu0 0.0
    %216 = vmatprep.subr.mxu0 0.0
    %217 = vmatpush2.msra.mxu0 0.0
    %218 = vmatprep.subr.mxu0 0.0
    %219 = vmatpush2.msra.mxu0 0.0
    %220 = vmatprep.mubr.f32.mxu0 0.0
    %221 = vmatmul.mubr.f32.gmra.mxu0 %v134
    %v222 = vpop.f32.mrf.mxu0
    %v223 = vadd.f32 %v155, %v222
    %v224 = vpop.f32.mrf.mxu0
    %225 = vdwg.mxu0
    %v226 = vmax.f32 %v223, 0.0
    %s227 = scalar_lea.vmem [#allocation5], 256
    %v228 = vld [vmem:[%s227] sm:$0xff]
    %v229 = vld [vmem:[%s227 + $0x8] sm:$0xff]
    %v230 = vld [vmem:[%s227 + $0x10] sm:$0xff]
    %v231 = vld [vmem:[%s227 + $0x18] sm:$0xff]
    %v232 = vld [vmem:[%s227 + $0x20] sm:$0xff]
    %v233 = vld [vmem:[%s227 + $0x28] sm:$0xff]
    %v234 = vld [vmem:[%s227 + $0x30] sm:$0xff]
    %v235 = vld [vmem:[%s227 + $0x38] sm:$0xff]
    %v236 = vld [vmem:[%s227 + $0x40] sm:$0xff]
    %v237 = vld [vmem:[%s227 + $0x48] sm:$0xff]
    %v238 = vld [vmem:[%s227 + $0x50] sm:$0xff]
    %v239 = vld [vmem:[%s227 + $0x58] sm:$0xff]
    %v240 = vld [vmem:[%s227 + $0x60] sm:$0xff]
    %v241 = vld [vmem:[%s227 + $0x68] sm:$0xff]
    %v242 = vld [vmem:[%s227 + $0x70] sm:$0xff]
    %v243 = vld [vmem:[%s227 + $0x78] sm:$0xff]
    %v244 = vlaneseq
    %v245 = vshrl.u32 %v244, 7
    %v246 = vsub.s32 2, %v245
    %v247 = vrot.slane %v52, %v246
    %248 = vmatprep.subr.mxu0 0.0
    %249 = vmatpush1.msra.mxu0 %v243
    %250 = vmatprep.subr.mxu0 0.0
    %251 = vmatpush1.msra.mxu0 %v242
    %252 = vmatprep.subr.mxu0 0.0
    %253 = vmatpush1.msra.mxu0 %v241
    %254 = vmatprep.subr.mxu0 0.0
    %255 = vmatpush1.msra.mxu0 %v240
    %256 = vmatprep.subr.mxu0 0.0
    %257 = vmatpush1.msra.mxu0 %v239
    %258 = vmatprep.subr.mxu0 0.0
    %259 = vmatpush1.msra.mxu0 %v238
    %260 = vmatprep.subr.mxu0 0.0
    %261 = vmatpush1.msra.mxu0 %v237
    %262 = vmatprep.subr.mxu0 0.0
    %263 = vmatpush1.msra.mxu0 %v236
    %264 = vmatprep.subr.mxu0 0.0
    %265 = vmatpush1.msra.mxu0 %v235
    %266 = vmatprep.subr.mxu0 0.0
    %267 = vmatpush1.msra.mxu0 %v234
    %268 = vmatprep.subr.mxu0 0.0
    %269 = vmatpush1.msra.mxu0 %v233
    %270 = vmatprep.subr.mxu0 0.0
    %271 = vmatpush1.msra.mxu0 %v232
    %272 = vmatprep.subr.mxu0 0.0
    %273 = vmatpush1.msra.mxu0 %v231
    %274 = vmatprep.subr.mxu0 0.0
    %275 = vmatpush1.msra.mxu0 %v230
    %276 = vmatprep.subr.mxu0 0.0
    %277 = vmatpush1.msra.mxu0 %v229
    %278 = vmatprep.subr.mxu0 0.0
    %279 = vmatpush1.msra.mxu0 %v228
    %280 = vmatprep.subr.mxu0 0.0
    %281 = vmatpush2.msra.mxu0 0.0
    %282 = vmatprep.subr.mxu0 0.0
    %283 = vmatpush2.msra.mxu0 0.0
    %284 = vmatprep.subr.mxu0 0.0
    %285 = vmatpush2.msra.mxu0 0.0
    %286 = vmatprep.subr.mxu0 0.0
    %287 = vmatpush2.msra.mxu0 0.0
    %288 = vmatprep.subr.mxu0 0.0
    %289 = vmatpush2.msra.mxu0 0.0
    %290 = vmatprep.subr.mxu0 0.0
    %291 = vmatpush2.msra.mxu0 0.0
    %292 = vmatprep.subr.mxu0 0.0
    %293 = vmatpush2.msra.mxu0 0.0
    %294 = vmatprep.subr.mxu0 0.0
    %295 = vmatpush2.msra.mxu0 0.0
    %296 = vmatprep.subr.mxu0 0.0
    %297 = vmatpush2.msra.mxu0 0.0
    %298 = vmatprep.subr.mxu0 0.0
    %299 = vmatpush2.msra.mxu0 0.0
    %300 = vmatprep.subr.mxu0 0.0
    %301 = vmatpush2.msra.mxu0 0.0
    %302 = vmatprep.subr.mxu0 0.0
    %303 = vmatpush2.msra.mxu0 0.0
    %304 = vmatprep.subr.mxu0 0.0
    %305 = vmatpush2.msra.mxu0 0.0
    %306 = vmatprep.subr.mxu0 0.0
    %307 = vmatpush2.msra.mxu0 0.0
    %308 = vmatprep.subr.mxu0 0.0
    %309 = vmatpush2.msra.mxu0 0.0
    %310 = vmatprep.subr.mxu0 0.0
    %311 = vmatpush2.msra.mxu0 0.0
    %312 = vmatprep.mubr.f32.mxu0 0.0
    %313 = vmatmul.mubr.f32.gmra.mxu0 %v226
    %v314 = vpop.f32.mrf.mxu0
    %v315 = vadd.f32 %v247, %v314
    %v316 = vpop.f32.mrf.mxu0
    %317 = vdwg.mxu0
    %v318 = vmax.f32 %v315, 0.0
    %s319 = scalar_lea.vmem [#allocation5], 384
    %v320 = vld [vmem:[%s319] sm:$0xff]
    %v321 = vld [vmem:[%s319 + $0x8] sm:$0xff]
    %v322 = vld [vmem:[%s319 + $0x10] sm:$0xff]
    %v323 = vld [vmem:[%s319 + $0x18] sm:$0xff]
    %v324 = vld [vmem:[%s319 + $0x20] sm:$0xff]
    %v325 = vld [vmem:[%s319 + $0x28] sm:$0xff]
    %v326 = vld [vmem:[%s319 + $0x30] sm:$0xff]
    %v327 = vld [vmem:[%s319 + $0x38] sm:$0xff]
    %v328 = vld [vmem:[%s319 + $0x40] sm:$0xff]
    %v329 = vld [vmem:[%s319 + $0x48] sm:$0xff]
    %v330 = vld [vmem:[%s319 + $0x50] sm:$0xff]
    %v331 = vld [vmem:[%s319 + $0x58] sm:$0xff]
    %v332 = vld [vmem:[%s319 + $0x60] sm:$0xff]
    %v333 = vld [vmem:[%s319 + $0x68] sm:$0xff]
    %v334 = vld [vmem:[%s319 + $0x70] sm:$0xff]
    %v335 = vld [vmem:[%s319 + $0x78] sm:$0xff]
    %v336 = vlaneseq
    %v337 = vshrl.u32 %v336, 7
    %v338 = vsub.s32 3, %v337
    %v339 = vrot.slane %v52, %v338
    %340 = vmatprep.subr.mxu0 0.0
    %341 = vmatpush1.msra.mxu0 %v335
    %342 = vmatprep.subr.mxu0 0.0
    %343 = vmatpush1.msra.mxu0 %v334
    %344 = vmatprep.subr.mxu0 0.0
    %345 = vmatpush1.msra.mxu0 %v333
    %346 = vmatprep.subr.mxu0 0.0
    %347 = vmatpush1.msra.mxu0 %v332
    %348 = vmatprep.subr.mxu0 0.0
    %349 = vmatpush1.msra.mxu0 %v331
    %350 = vmatprep.subr.mxu0 0.0
    %351 = vmatpush1.msra.mxu0 %v330
    %352 = vmatprep.subr.mxu0 0.0
    %353 = vmatpush1.msra.mxu0 %v329
    %354 = vmatprep.subr.mxu0 0.0
    %355 = vmatpush1.msra.mxu0 %v328
    %356 = vmatprep.subr.mxu0 0.0
    %357 = vmatpush1.msra.mxu0 %v327
    %358 = vmatprep.subr.mxu0 0.0
    %359 = vmatpush1.msra.mxu0 %v326
    %360 = vmatprep.subr.mxu0 0.0
    %361 = vmatpush1.msra.mxu0 %v325
    %362 = vmatprep.subr.mxu0 0.0
    %363 = vmatpush1.msra.mxu0 %v324
    %364 = vmatprep.subr.mxu0 0.0
    %365 = vmatpush1.msra.mxu0 %v323
    %366 = vmatprep.subr.mxu0 0.0
    %367 = vmatpush1.msra.mxu0 %v322
    %368 = vmatprep.subr.mxu0 0.0
    %369 = vmatpush1.msra.mxu0 %v321
    %370 = vmatprep.subr.mxu0 0.0
    %371 = vmatpush1.msra.mxu0 %v320
    %372 = vmatprep.subr.mxu0 0.0
    %373 = vmatpush2.msra.mxu0 0.0
    %374 = vmatprep.subr.mxu0 0.0
    %375 = vmatpush2.msra.mxu0 0.0
    %376 = vmatprep.subr.mxu0 0.0
    %377 = vmatpush2.msra.mxu0 0.0
    %378 = vmatprep.subr.mxu0 0.0
    %379 = vmatpush2.msra.mxu0 0.0
    %380 = vmatprep.subr.mxu0 0.0
    %381 = vmatpush2.msra.mxu0 0.0
    %382 = vmatprep.subr.mxu0 0.0
    %383 = vmatpush2.msra.mxu0 0.0
    %384 = vmatprep.subr.mxu0 0.0
    %385 = vmatpush2.msra.mxu0 0.0
    %386 = vmatprep.subr.mxu0 0.0
    %387 = vmatpush2.msra.mxu0 0.0
    %388 = vmatprep.subr.mxu0 0.0
    %389 = vmatpush2.msra.mxu0 0.0
    %390 = vmatprep.subr.mxu0 0.0
    %391 = vmatpush2.msra.mxu0 0.0
    %392 = vmatprep.subr.mxu0 0.0
    %393 = vmatpush2.msra.mxu0 0.0
    %394 = vmatprep.subr.mxu0 0.0
    %395 = vmatpush2.msra.mxu0 0.0
    %396 = vmatprep.subr.mxu0 0.0
    %397 = vmatpush2.msra.mxu0 0.0
    %398 = vmatprep.subr.mxu0 0.0
    %399 = vmatpush2.msra.mxu0 0.0
    %400 = vmatprep.subr.mxu0 0.0
    %401 = vmatpush2.msra.mxu0 0.0
    %402 = vmatprep.subr.mxu0 0.0
    %403 = vmatpush2.msra.mxu0 0.0
    %404 = vmatprep.mubr.f32.mxu0 0.0
    %405 = vmatmul.mubr.f32.gmra.mxu0 %v318
    %v406 = vpop.f32.mrf.mxu0
    %v407 = vadd.f32 %v339, %v406
    %v408 = vpop.f32.mrf.mxu0
    %409 = vdwg.mxu0
    %v410 = vtanh.pop %v407
    %vm411 = vcmask 64512
    %412 = vst.msk [vmem:[#allocation8] sm:$0xff] %vm411, %v410
    // Predicated region
    $region26: #{tpu_custom_call.1} parent=1 // pred_check
      _
    $region27: #{tpu_custom_call.1} parent=1 // pred_check_branch
      %414 = sbr.rel (0) target = $region29
    $region28: #{tpu_custom_call.1} parent=1 // pred_region
      %s416 = ssub.s32 128, 128
      %417 = vsyncadd [#allocation4], %s416
      %s419 = sshll.u32 [#allocation8], 4
      %s420 = int_to_ptr.vmem [resolvable:$true] %s419
      %422 = dma.vmem_to_hbm [thread:$0]  %s420, 128, %s3, [#allocation4]
    $region29: #{tpu_custom_call.1} parent=1 // pred_fallthru
      _
    // Predicated region
    $region30: #{tpu_custom_call.1} parent=1 // pred_check
      _
    $region31: #{tpu_custom_call.1} parent=1 // pred_check_branch
      %424 = sbr.rel (0) target = $region33
    $region32: #{tpu_custom_call.1} parent=1 // pred_region
      %425 = dma.done [#allocation4], 128
    $region33: #{tpu_custom_call.1} parent=1 // pred_fallthru
      _
    %426 = vsyncpa [#allocation3], 1
    %427 = vsyncpa [#allocation6], 1
    %428 = vsyncpa [#allocation4], 1

</llo_original>
